<compile_context>
chip_gen: v6e
topology: v6e:2x2x1
jax: 0.10.0
libtpu: 0.0.40
codegen_flags: <defaults>
</compile_context>

<pallas_src>
import functools
import math

import jax
import jax.numpy as jnp
from jax import lax
from jax.experimental import pallas as pl
from jax.experimental.pallas import tpu as pltpu

EPS = 1e-5          # PyTorch InstanceNorm2d default
STYLE_DIM = 64
_LANE = 128


def _hw_budgets():
    """Returns (vmem_limit_bytes, per-x-block byte budget) sized for this chip."""
    try:
        vmem_phys = int(pltpu.get_tpu_info().vmem_capacity_bytes)
    except Exception:
        vmem_phys = 64 * 1024 * 1024          # conservative (v7x per-TC)
    vmem_limit = min(int(vmem_phys * 0.70), 100 * 1024 * 1024)
    # One x-block is double-buffered inbound, the output block outbound, and
    # the fp32 intermediates add roughly two more copies -> ~6-8x the block
    # size of pipelined footprint.  Budget one block at ~1/8 of the limit.
    per_block = max(vmem_limit // 8, 256 * 1024)
    return vmem_limit, per_block


def _sublane_align(itemsize):
    # f32 -> 8 sublanes, bf16 -> 16 (packed), int8/fp8 -> 32
    return {4: 8, 2: 16, 1: 32}.get(itemsize, 8)


def _pick_c_tile(C, hw_pad, itemsize, per_block_bytes, align):
    """Channel band for the fused path, or None if even the smallest legal
    band busts the per-block budget (-> use the HW-tiled two-pass path)."""
    row_bytes = hw_pad * itemsize
    if C % align != 0 or C <= align:
        return C if C * row_bytes <= per_block_bytes else None
    max_rows = per_block_bytes // row_bytes
    if max_rows < align:
        return None
    c_tile = min(C, (max_rows // align) * align)
    while C % c_tile != 0:
        c_tile -= align
    return c_tile


# --------------------------- fused single-pass kernel ------------------------

def _adain_fused_kernel(x_ref, mu_ref, std_ref, out_ref, *, inv_hw):
    # x_ref: (1, c_tile, HW_pad); mu_ref/std_ref: (1, c_tile, 1)
    xf = x_ref[0].astype(jnp.float32)                          # (c_tile, HW_pad)

    # Single-pass statistics over the lane (spatial) axis.  Zero padding does
    # not perturb the sums; we divide by the true H*W.  Biased variance
    # matches PyTorch InstanceNorm2d.
    s1 = jnp.sum(xf, axis=-1, keepdims=True)                   # (c_tile, 1)
    s2 = jnp.sum(xf * xf, axis=-1, keepdims=True)              # (c_tile, 1)
    mean = s1 * inv_hw
    var = jnp.maximum(s2 * inv_hw - mean * mean, 0.0)

    # Folded normalize + affine: out = x * scale + shift  (one pass over x).
    scale = lax.rsqrt(var + jnp.float32(EPS)) * (1.0 + std_ref[0].astype(jnp.float32))
    shift = mu_ref[0].astype(jnp.float32) - mean * scale
    out_ref[0] = (xf * scale + shift).astype(out_ref.dtype)


# --------------------- fallback path for very large H*W ----------------------

def _stats_kernel(x_ref, sum_ref, sq_ref, acc_s, acc_q):
    h = pl.program_id(2)

    @pl.when(h == 0)
    def _():
        acc_s[...] = jnp.zeros_like(acc_s)
        acc_q[...] = jnp.zeros_like(acc_q)

    xf = x_ref[0].astype(jnp.float32)                          # (c_tile, hw_tile)
    acc_s[...] += jnp.sum(xf, axis=-1, keepdims=True)
    acc_q[...] += jnp.sum(xf * xf, axis=-1, keepdims=True)

    @pl.when(h == pl.num_programs(2) - 1)
    def _():
        sum_ref[0] = acc_s[...]
        sq_ref[0] = acc_q[...]


def _apply_kernel(x_ref, scale_ref, shift_ref, out_ref):
    xf = x_ref[0].astype(jnp.float32)
    out_ref[0] = (xf * scale_ref[0] + shift_ref[0]).astype(out_ref.dtype)


# --------------------------------- wrapper -----------------------------------

@functools.partial(jax.jit, static_argnames=("block_budget",))
def adain_forward(x_nchw, style, w_mu, b_mu, w_std, b_std, block_budget=None):
    """AdaIN forward.  x_nchw: (N, C, H, W), style: (N, 64),
    w_mu/w_std: (C, 64) (PyTorch Linear layout), b_mu/b_std: (C,)."""
    N, C, H, W = x_nchw.shape
    HW = H * W
    itemsize = jnp.dtype(x_nchw.dtype).itemsize
    align = _sublane_align(itemsize)
    vmem_limit, per_block = _hw_budgets()
    if block_budget is not None:
        per_block = int(block_budget)

    # Style projections: one tiny XLA matmul per call (2*N*C*64 FLOPs), fed to
    # the kernel as per-(n, c) scalars.
    mu = (style @ w_mu.T + b_mu).astype(jnp.float32).reshape(N, C, 1)
    std = (style @ w_std.T + b_std).astype(jnp.float32).reshape(N, C, 1)

    x = x_nchw.reshape(N, C, HW)            # free reshape; NCHW stays contiguous

    # Lane-dense spatial axis (unmasked vst): pad H*W to a multiple of 128.
    hw_pad = ((HW + _LANE - 1) // _LANE) * _LANE
    c_tile = _pick_c_tile(C, hw_pad, itemsize, per_block, align)

    if c_tile is not None:
        # ---------------- fused single-pass path (common case) ----------------
        if hw_pad != HW:
            x = jnp.pad(x, ((0, 0), (0, 0), (0, hw_pad - HW)))
        n_cblk = C // c_tile
        # TODO(synk): pass input_output_aliases={0: 0} if callers never reuse x.
        out = pl.pallas_call(
            functools.partial(_adain_fused_kernel, inv_hw=1.0 / HW),
            out_shape=jax.ShapeDtypeStruct((N, C, hw_pad), x_nchw.dtype),
            grid=(N, n_cblk),
            in_specs=[
                pl.BlockSpec((1, c_tile, hw_pad), lambda n, c: (n, c, 0)),
                pl.BlockSpec((1, c_tile, 1), lambda n, c: (n, c, 0)),
                pl.BlockSpec((1, c_tile, 1), lambda n, c: (n, c, 0)),
            ],
            out_specs=pl.BlockSpec((1, c_tile, hw_pad), lambda n, c: (n, c, 0)),
            compiler_params=pltpu.CompilerParams(
                dimension_semantics=("parallel", "parallel"),
                vmem_limit_bytes=vmem_limit),
        )(x, mu, std)
        if hw_pad != HW:
            out = out[:, :, :HW]
        return out.reshape(N, C, H, W)

    # ----------- fallback: tile the spatial axis (two-pass, robust) -----------
    c_tile = C if (C % align != 0 or C <= align) else align
    hw_tile = max(_LANE, (per_block // (c_tile * itemsize)) // _LANE * _LANE)
    hw_tile = min(hw_tile, hw_pad)
    hw_pad2 = ((HW + hw_tile - 1) // hw_tile) * hw_tile
    if hw_pad2 != HW:
        x = jnp.pad(x, ((0, 0), (0, 0), (0, hw_pad2 - HW)))
    n_cblk = C // c_tile
    n_hwblk = hw_pad2 // hw_tile

    sums, sqs = pl.pallas_call(
        _stats_kernel,
        out_shape=(jax.ShapeDtypeStruct((N, C, 1), jnp.float32),
                   jax.ShapeDtypeStruct((N, C, 1), jnp.float32)),
        grid=(N, n_cblk, n_hwblk),
        in_specs=[pl.BlockSpec((1, c_tile, hw_tile), lambda n, c, h: (n, c, h))],
        out_specs=(pl.BlockSpec((1, c_tile, 1), lambda n, c, h: (n, c, 0)),
                   pl.BlockSpec((1, c_tile, 1), lambda n, c, h: (n, c, 0))),
        scratch_shapes=[pltpu.VMEM((c_tile, 1), jnp.float32),
                        pltpu.VMEM((c_tile, 1), jnp.float32)],
        compiler_params=pltpu.CompilerParams(
            dimension_semantics=("parallel", "parallel", "arbitrary"),
            vmem_limit_bytes=vmem_limit),
    )(x)

    mean = sums / HW                                        # (N, C, 1) f32
    var = jnp.maximum(sqs / HW - mean * mean, 0.0)          # biased variance
    scale = lax.rsqrt(var + EPS) * (1.0 + std)
    shift = mu - mean * scale

    out = pl.pallas_call(
        _apply_kernel,
        out_shape=jax.ShapeDtypeStruct((N, C, hw_pad2), x_nchw.dtype),
        grid=(N, n_cblk, n_hwblk),
        in_specs=[
            pl.BlockSpec((1, c_tile, hw_tile), lambda n, c, h: (n, c, h)),
            pl.BlockSpec((1, c_tile, 1), lambda n, c, h: (n, c, 0)),
            pl.BlockSpec((1, c_tile, 1), lambda n, c, h: (n, c, 0)),
        ],
        out_specs=pl.BlockSpec((1, c_tile, hw_tile), lambda n, c, h: (n, c, h)),
        compiler_params=pltpu.CompilerParams(
            dimension_semantics=("parallel", "parallel", "parallel"),
            vmem_limit_bytes=vmem_limit),
    )(x, scale, shift)
    if hw_pad2 != HW:
        out = out[:, :, :HW]
    return out.reshape(N, C, H, W)


def adain_reference(x, style, w_mu, b_mu, w_std, b_std):
    """Plain-JAX reference mirroring the PyTorch forward."""
    xf = x.astype(jnp.float32)
    mean = xf.mean(axis=(2, 3), keepdims=True)
    var = xf.var(axis=(2, 3), keepdims=True)        # biased var = PyTorch IN
    x_norm = (xf - mean) / jnp.sqrt(var + EPS)
    mu = style @ w_mu.T + b_mu                      # (N, C)
    std = style @ w_std.T + b_std                   # (N, C)
    return x_norm * (1.0 + std)[:, :, None, None] + mu[:, :, None, None]


if __name__ == "__main__":
    # Small shapes consistent with the module: AdaIN(num_features=C), style dim 64.
    N, C, H, W = 2, 4, 16, 16

    key = jax.random.PRNGKey(0)
    k_x, k_s, k_wm, k_bm, k_ws, k_bs = jax.random.split(key, 6)

    x = jax.random.normal(k_x, (N, C, H, W), dtype=jnp.float32)
    style = jax.random.normal(k_s, (N, STYLE_DIM), dtype=jnp.float32)

    # Deterministic synthetic Linear parameters (PyTorch layout: (out, in)).
    bound = 1.0 / math.sqrt(STYLE_DIM)
    w_mu = jax.random.uniform(k_wm, (C, STYLE_DIM), jnp.float32, -bound, bound)
    b_mu = jax.random.uniform(k_bm, (C,), jnp.float32, -bound, bound)
    w_std = jax.random.uniform(k_ws, (C, STYLE_DIM), jnp.float32, -bound, bound)
    b_std = jax.random.uniform(k_bs, (C,), jnp.float32, -bound, bound)

    ref = adain_reference(x, style, w_mu, b_mu, w_std, b_std)

    # Fused single-pass path.
    out = adain_forward(x, style, w_mu, b_mu, w_std, b_std)
    out = jax.block_until_ready(out)
    assert out.shape == (N, C, H, W), out.shape
    assert jnp.allclose(out, ref, atol=1e-4, rtol=1e-4), float(
        jnp.max(jnp.abs(out - ref)))

    # Force the HW-tiled two-pass fallback (tiny per-block budget) and verify
    # it matches as well, so the shape-robust path is exercised too.
    out2 = adain_forward(x, style, w_mu, b_mu, w_std, b_std, block_budget=2048)
    out2 = jax.block_until_ready(out2)
    assert jnp.allclose(out2, ref, atol=1e-4, rtol=1e-4), float(
        jnp.max(jnp.abs(out2 - ref)))

    print("KERNEL_OK")
</pallas_src>

<mosaic_0001>
module attributes {stable_mosaic.version = 11 : i64} {
  func.func @_adain_fused_kernel(%arg0: i32, %arg1: i32, %arg2: memref<1x4x256xf32, #tpu.memory_space<vmem>>, %arg3: memref<1x4x1xf32, #tpu.memory_space<vmem>>, %arg4: memref<1x4x1xf32, #tpu.memory_space<vmem>>, %arg5: memref<1x4x256xf32, #tpu.memory_space<vmem>>) attributes {dimension_semantics = [#tpu.dimension_semantics<parallel>, #tpu.dimension_semantics<parallel>], iteration_bounds = array<i64: 2, 1>, scalar_prefetch = 0 : i64, scratch_operands = 0 : i64, tpu.core_type = #tpu.core_type<tc>, window_params = [{transform_indices = @transform_0, window_bounds = array<i64: 1, 4, 256>}, {transform_indices = @transform_1, window_bounds = array<i64: 1, 4, 1>}, {transform_indices = @transform_2, window_bounds = array<i64: 1, 4, 1>}, {transform_indices = @transform_3, window_bounds = array<i64: 1, 4, 256>}]} {
    %c0 = arith.constant 0 : index
    %c0_0 = arith.constant 0 : index
    %c0_1 = arith.constant 0 : index
    %0 = vector.load %arg2[%c0, %c0_0, %c0_1] : memref<1x4x256xf32, #tpu.memory_space<vmem>>, vector<1x4x256xf32>
    %1 = vector.shape_cast %0 : vector<1x4x256xf32> to vector<4x256xf32>
    %cst = arith.constant dense<0.000000e+00> : vector<4xf32>
    %2 = vector.multi_reduction <add>, %1, %cst [1] : vector<4x256xf32> to vector<4xf32>
    %3 = vector.shape_cast %2 : vector<4xf32> to vector<4x1xf32>
    %4 = arith.mulf %1, %1 : vector<4x256xf32>
    %cst_2 = arith.constant dense<0.000000e+00> : vector<4xf32>
    %5 = vector.multi_reduction <add>, %4, %cst_2 [1] : vector<4x256xf32> to vector<4xf32>
    %6 = vector.shape_cast %5 : vector<4xf32> to vector<4x1xf32>
    %cst_3 = arith.constant 3.906250e-03 : f32
    %7 = vector.broadcast %cst_3 : f32 to vector<4x1xf32>
    %8 = arith.mulf %3, %7 : vector<4x1xf32>
    %cst_4 = arith.constant 3.906250e-03 : f32
    %9 = vector.broadcast %cst_4 : f32 to vector<4x1xf32>
    %10 = arith.mulf %6, %9 : vector<4x1xf32>
    %11 = arith.mulf %8, %8 : vector<4x1xf32>
    %12 = arith.subf %10, %11 : vector<4x1xf32>
    %cst_5 = arith.constant 0.000000e+00 : f32
    %13 = vector.broadcast %cst_5 : f32 to vector<4x1xf32>
    %14 = arith.maximumf %12, %13 : vector<4x1xf32>
    %cst_6 = arith.constant 9.99999974E-6 : f32
    %15 = vector.broadcast %cst_6 : f32 to vector<4x1xf32>
    %16 = arith.addf %14, %15 : vector<4x1xf32>
    %17 = math.rsqrt %16 : vector<4x1xf32>
    %c0_7 = arith.constant 0 : index
    %c0_8 = arith.constant 0 : index
    %c0_9 = arith.constant 0 : index
    %18 = vector.load %arg4[%c0_7, %c0_8, %c0_9] : memref<1x4x1xf32, #tpu.memory_space<vmem>>, vector<1x4x1xf32>
    %19 = vector.shape_cast %18 : vector<1x4x1xf32> to vector<4x1xf32>
    %cst_10 = arith.constant 1.000000e+00 : f32
    %20 = vector.broadcast %cst_10 : f32 to vector<4x1xf32>
    %21 = arith.addf %20, %19 : vector<4x1xf32>
    %22 = arith.mulf %17, %21 : vector<4x1xf32>
    %c0_11 = arith.constant 0 : index
    %c0_12 = arith.constant 0 : index
    %c0_13 = arith.constant 0 : index
    %23 = vector.load %arg3[%c0_11, %c0_12, %c0_13] : memref<1x4x1xf32, #tpu.memory_space<vmem>>, vector<1x4x1xf32>
    %24 = vector.shape_cast %23 : vector<1x4x1xf32> to vector<4x1xf32>
    %25 = arith.mulf %8, %22 : vector<4x1xf32>
    %26 = arith.subf %24, %25 : vector<4x1xf32>
    %27 = vector.broadcast %22 : vector<4x1xf32> to vector<4x256xf32>
    %28 = arith.mulf %1, %27 : vector<4x256xf32>
    %29 = vector.broadcast %26 : vector<4x1xf32> to vector<4x256xf32>
    %30 = arith.addf %28, %29 : vector<4x256xf32>
    %c0_14 = arith.constant 0 : index
    %c0_15 = arith.constant 0 : index
    %c0_16 = arith.constant 0 : index
    %31 = vector.load %arg5[%c0_14, %c0_15, %c0_16] : memref<1x4x256xf32, #tpu.memory_space<vmem>>, vector<1x4x256xf32>
    %32 = vector.shape_cast %31 : vector<1x4x256xf32> to vector<4x256xf32>
    %33 = vector.shape_cast %30 : vector<4x256xf32> to vector<1x4x256xf32>
    tpu.vector_store %arg5[%c0_14, %c0_15, %c0_16], %33 {strides = array<i32>} : memref<1x4x256xf32, #tpu.memory_space<vmem>>, vector<1x4x256xf32>,
    return
  }
  func.func @transform_0(%arg0: i32, %arg1: i32) -> (i32, i32, i32) {
    %c0_i32 = arith.constant 0 : i32
    %c0_i32_0 = arith.constant 0 : i32
    return %arg0, %arg1, %c0_i32 : i32, i32, i32
  }
  func.func @transform_1(%arg0: i32, %arg1: i32) -> (i32, i32, i32) {
    %c0_i32 = arith.constant 0 : i32
    %c0_i32_0 = arith.constant 0 : i32
    return %arg0, %arg1, %c0_i32 : i32, i32, i32
  }
  func.func @transform_2(%arg0: i32, %arg1: i32) -> (i32, i32, i32) {
    %c0_i32 = arith.constant 0 : i32
    %c0_i32_0 = arith.constant 0 : i32
    return %arg0, %arg1, %c0_i32 : i32, i32, i32
  }
  func.func @transform_3(%arg0: i32, %arg1: i32) -> (i32, i32, i32) {
    %c0_i32 = arith.constant 0 : i32
    %c0_i32_0 = arith.constant 0 : i32
    return %arg0, %arg1, %c0_i32 : i32, i32, i32
  }
}

</mosaic_0001>

<llo_original>
// kernel: adain_forward.1
$region0: #{adain_forward.1}
  #allocation0 [shape = 'u32[]', space=smem, size = 0x4, offset = 0x4, fixed_abs, tag = 'smem constant byte address 0x4 - core index']
  #allocation1 [shape = 'u32[144,128]{1,0:T(1,128)}', space=vmem, size = 0x12000, scoped, tag = 'internal scratch']
  %s0 = inlined_call_operand.vmem [shape: f32[2,4,256], index: 0, kind: input, shape index: {}]
  %s1 = inlined_call_operand.vmem [shape: f32[2,4,1], index: 1, kind: input, shape index: {}]
  %s2 = inlined_call_operand.vmem [shape: f32[2,4,1], index: 2, kind: input, shape index: {}]
  %s3 = inlined_call_operand.vmem [shape: f32[2,4,256], index: 3, kind: output, shape index: {}]
  %s4 = sld [smem:[#allocation0]]
  $region45: #{adain_forward.1} parent=0
    _
  %s6 = ssub.s32 1, %s4
  %s7 = scalar_select 0, %s6, %s4
  loop: start=0, step=1, limit=4
  $region2: #{adain_forward.1} parent=0 // loop_pre_header
    _
  $region3: #{adain_forward.1} parent=0 // loop_header
    %s9 = sphi 0, %s13
    %p10 = scmp.ge.s32.totalorder %s9, 4
    %s16 = sphi 0, %s28
    %s17 = sphi 0, %s24
    %s18 = sphi 0, %s16
    %s19 = sphi 0, %s17
    %s20 = sphi 0, %s18
    %s21 = sphi 0, %s19
    %s33 = sphi 0, %s35
    %s36 = sphi 0, %s33
    %s37 = sphi 0, %s36
    %s53 = sphi 0, %s37
    %s61 = sphi 0, %s63
    %s64 = sphi 0, %s61
    %s65 = sphi 0, %s64
    %s81 = sphi 0, %s65
    %s89 = sphi 0, %s91
    %s92 = sphi 0, %s89
    %s93 = sphi 0, %s92
    %s109 = sphi 0, %s93
    %s117 = sphi 0, %s119
    %s120 = sphi 0, %s117
    %s121 = sphi 0, %s120
    %s137 = sphi 0, %s121
  $region4: #{adain_forward.1} parent=0 // loop_header_branch
    %12 = sbr.rel (%p10) target = $region8
  $region5: #{adain_forward.1} parent=0 // loop_body
    %s14 = ssub.s32 %s9, 1
    %s15 = ssub.s32 %s9, 2
    %s22 = sadd.s32 1, %s17
    %p23 = scmp.ge.s32.totalorder %s22, 1
    %s24 = scalar_select %p23, 0, %s22
    %s25 = sadd.s32 1, %s16
    %s26 = scalar_select %p23, %s25, %s16
    %p27 = scmp.ge.s32.totalorder %s26, 2
    %s28 = scalar_select %p27, 0, %s26
    %s29 = ssub.s32 %s16, %s28
    %s30 = ssub.s32 %s17, %s24
    %s31 = sor.u32 %s29, %s30
    %p32 = scmp.eq.s32.totalorder %s31, 0
    %s34 = sadd.s32 %s33, 1
    %s35 = scalar_select %p32, %s33, %s34
    %p38 = pneg %p32
    %p39 = scmp.eq.s32.totalorder %s9, 1
    %p40 = por %p38, %p39
    %p41 = scmp.ne.s32.totalorder %s33, %s36
    %p42 = scmp.eq.s32.totalorder %s9, 0
    %p43 = por %p41, %p42
    %p44 = scmp.ne.s32.totalorder %s33, %s36
    %p45 = scmp.eq.s32.totalorder %s14, 1
    %p46 = por %p44, %p45
    %p47 = scmp.ne.s32.totalorder %s36, %s37
    %p48 = scmp.eq.s32.totalorder %s14, 0
    %p49 = por %p47, %p48
    %p50 = scmp.ne.s32.totalorder %s36, %s37
    %p51 = scmp.eq.s32.totalorder %s15, 1
    %p52 = por %p50, %p51
    %p54 = scmp.ne.s32.totalorder %s37, %s53
    %p55 = scmp.eq.s32.totalorder %s15, 0
    %p56 = por %p54, %p55
    %s57 = ssub.s32 %s16, %s28
    %s58 = ssub.s32 %s17, %s24
    %s59 = sor.u32 %s57, %s58
    %p60 = scmp.eq.s32.totalorder %s59, 0
    %s62 = sadd.s32 %s61, 1
    %s63 = scalar_select %p60, %s61, %s62
    %p66 = pneg %p60
    %p67 = scmp.eq.s32.totalorder %s9, 1
    %p68 = por %p66, %p67
    %p69 = scmp.ne.s32.totalorder %s61, %s64
    %p70 = scmp.eq.s32.totalorder %s9, 0
    %p71 = por %p69, %p70
    %p72 = scmp.ne.s32.totalorder %s61, %s64
    %p73 = scmp.eq.s32.totalorder %s14, 1
    %p74 = por %p72, %p73
    %p75 = scmp.ne.s32.totalorder %s64, %s65
    %p76 = scmp.eq.s32.totalorder %s14, 0
    %p77 = por %p75, %p76
    %p78 = scmp.ne.s32.totalorder %s64, %s65
    %p79 = scmp.eq.s32.totalorder %s15, 1
    %p80 = por %p78, %p79
    %p82 = scmp.ne.s32.totalorder %s65, %s81
    %p83 = scmp.eq.s32.totalorder %s15, 0
    %p84 = por %p82, %p83
    %s85 = ssub.s32 %s16, %s28
    %s86 = ssub.s32 %s17, %s24
    %s87 = sor.u32 %s85, %s86
    %p88 = scmp.eq.s32.totalorder %s87, 0
    %s90 = sadd.s32 %s89, 1
    %s91 = scalar_select %p88, %s89, %s90
    %p94 = pneg %p88
    %p95 = scmp.eq.s32.totalorder %s9, 1
    %p96 = por %p94, %p95
    %p97 = scmp.ne.s32.totalorder %s89, %s92
    %p98 = scmp.eq.s32.totalorder %s9, 0
    %p99 = por %p97, %p98
    %p100 = scmp.ne.s32.totalorder %s89, %s92
    %p101 = scmp.eq.s32.totalorder %s14, 1
    %p102 = por %p100, %p101
    %p103 = scmp.ne.s32.totalorder %s92, %s93
    %p104 = scmp.eq.s32.totalorder %s14, 0
    %p105 = por %p103, %p104
    %p106 = scmp.ne.s32.totalorder %s92, %s93
    %p107 = scmp.eq.s32.totalorder %s15, 1
    %p108 = por %p106, %p107
    %p110 = scmp.ne.s32.totalorder %s93, %s109
    %p111 = scmp.eq.s32.totalorder %s15, 0
    %p112 = por %p110, %p111
    %s113 = ssub.s32 %s16, %s28
    %s114 = ssub.s32 %s17, %s24
    %s115 = sor.u32 %s113, %s114
    %p116 = scmp.eq.s32.totalorder %s115, 0
    %s118 = sadd.s32 %s117, 1
    %s119 = scalar_select %p116, %s117, %s118
    %p122 = pneg %p116
    %p123 = scmp.eq.s32.totalorder %s9, 1
    %p124 = por %p122, %p123
    %p125 = scmp.ne.s32.totalorder %s117, %s120
    %p126 = scmp.eq.s32.totalorder %s9, 0
    %p127 = por %p125, %p126
    %p128 = scmp.ne.s32.totalorder %s117, %s120
    %p129 = scmp.eq.s32.totalorder %s14, 1
    %p130 = por %p128, %p129
    %p131 = scmp.ne.s32.totalorder %s120, %s121
    %p132 = scmp.eq.s32.totalorder %s14, 0
    %p133 = por %p131, %p132
    %p134 = scmp.ne.s32.totalorder %s120, %s121
    %p135 = scmp.eq.s32.totalorder %s15, 1
    %p136 = por %p134, %p135
    %p138 = scmp.ne.s32.totalorder %s121, %s137
    %p139 = scmp.eq.s32.totalorder %s15, 0
    %p140 = por %p138, %p139
    %p141 = scmp.le.s32.totalorder 1, %s9
    %p142 = scmp.lt.s32.totalorder %s9, 3
    %p143 = pnand %p141, %p142
    %p144 = pneg %p143
    // Predicated region
    $region9: #{adain_forward.1} parent=5 // pred_check
      _
    $region10: #{adain_forward.1} parent=5 // pred_check_branch
      %146 = sbr.rel (%p143) target = $region12
    $region11: #{adain_forward.1} parent=5 // pred_region
      %s147 = ssub.s32 %s9, 1
    $region12: #{adain_forward.1} parent=5 // pred_fallthru
      _
    %p148 = scmp.lt.s32.totalorder %s9, 2
    // Predicated region
    $region13: #{adain_forward.1} parent=5 // pred_check
      %p149 = pneg %p148
    $region14: #{adain_forward.1} parent=5 // pred_check_branch
      %151 = sbr.rel (%p149) target = $region16
    $region15: #{adain_forward.1} parent=5 // pred_region
      // Predicated region
      $region17: #{adain_forward.1} parent=15 // pred_check
        %p152 = pneg %p43
      $region18: #{adain_forward.1} parent=15 // pred_check_branch
        %154 = sbr.rel (%p152) target = $region20
      $region19: #{adain_forward.1} parent=15 // pred_region
        %p155 = scmp.lt.s32.totalorder %s16, 1
        %s156 = scalar_select %p155, %s16, 1
        %p157 = scmp.lt.s32.totalorder %s17, 0
        %s158 = scalar_select %p157, %s17, 0
        %s159 = smul.addr %s158, 2
        %s160 = smul.addr %s156, 2
        %s161 = sadd.s32 %s159, %s160
        %s162 = smul.addr %s161, 4
        %s163 = scalar_lea.vmem %s0, %s162
      $region20: #{adain_forward.1} parent=15 // pred_fallthru
        _
      // Predicated region
      $region21: #{adain_forward.1} parent=15 // pred_check
        %p164 = pneg %p71
      $region22: #{adain_forward.1} parent=15 // pred_check_branch
        %166 = sbr.rel (%p164) target = $region24
      $region23: #{adain_forward.1} parent=15 // pred_region
        %p167 = scmp.lt.s32.totalorder %s16, 1
        %s168 = scalar_select %p167, %s16, 1
        %p169 = scmp.lt.s32.totalorder %s17, 0
        %s170 = scalar_select %p169, %s17, 0
        %s171 = sadd.s32 %s170, %s168
        %s172 = smul.addr %s171, 4
        %s173 = scalar_lea.vmem %s1, %s172
      $region24: #{adain_forward.1} parent=15 // pred_fallthru
        _
      // Predicated region
      $region25: #{adain_forward.1} parent=15 // pred_check
        %p174 = pneg %p99
      $region26: #{adain_forward.1} parent=15 // pred_check_branch
        %176 = sbr.rel (%p174) target = $region28
      $region27: #{adain_forward.1} parent=15 // pred_region
        %p177 = scmp.lt.s32.totalorder %s16, 1
        %s178 = scalar_select %p177, %s16, 1
        %p179 = scmp.lt.s32.totalorder %s17, 0
        %s180 = scalar_select %p179, %s17, 0
        %s181 = sadd.s32 %s180, %s178
        %s182 = smul.addr %s181, 4
        %s183 = scalar_lea.vmem %s2, %s182
      $region28: #{adain_forward.1} parent=15 // pred_fallthru
        _
    $region16: #{adain_forward.1} parent=5 // pred_fallthru
      _
    %p184 = scmp.le.s32.totalorder 1, %s9
    %p185 = scmp.lt.s32.totalorder %s9, 3
    %p186 = pnand %p184, %p185
    %p187 = pneg %p186
    // Predicated region
    $region29: #{adain_forward.1} parent=5 // pred_check
      _
    $region30: #{adain_forward.1} parent=5 // pred_check_branch
      %189 = sbr.rel (%p186) target = $region32
    $region31: #{adain_forward.1} parent=5 // pred_region
      %s190 = ssub.s32 %s9, 1
      %p191 = scmp.lt.s32.totalorder %s18, 1
      %s192 = scalar_select %p191, %s18, 1
      %p193 = scmp.lt.s32.totalorder %s19, 0
      %s194 = scalar_select %p193, %s19, 0
      %s195 = smul.addr %s194, 2
      %s196 = smul.addr %s192, 2
      %s197 = sadd.s32 %s195, %s196
      %s198 = smul.addr %s197, 4
      %s199 = scalar_lea.vmem %s0, %s198
      %p200 = pneg %p49
      %p201 = pneg %p46
      %p202 = scmp.lt.s32.totalorder %s18, 1
      %s203 = scalar_select %p202, %s18, 1
      %p204 = scmp.lt.s32.totalorder %s19, 0
      %s205 = scalar_select %p204, %s19, 0
      %s206 = sadd.s32 %s205, %s203
      %s207 = smul.addr %s206, 4
      %s208 = scalar_lea.vmem %s1, %s207
      %p209 = pneg %p77
      %p210 = pneg %p74
      %p211 = scmp.lt.s32.totalorder %s18, 1
      %s212 = scalar_select %p211, %s18, 1
      %p213 = scmp.lt.s32.totalorder %s19, 0
      %s214 = scalar_select %p213, %s19, 0
      %s215 = sadd.s32 %s214, %s212
      %s216 = smul.addr %s215, 4
      %s217 = scalar_lea.vmem %s2, %s216
      %p218 = pneg %p105
      %p219 = pneg %p102
      %p220 = pneg %p133
      %p221 = pneg %p130
      %p222 = scmp.lt.s32.totalorder %s18, 1
      %s223 = scalar_select %p222, %s18, 1
      %p224 = scmp.lt.s32.totalorder %s19, 0
      %s225 = scalar_select %p224, %s19, 0
      %s226 = smul.addr %s225, 2
      %s227 = smul.addr %s223, 2
      %s228 = sadd.s32 %s226, %s227
      %s229 = smul.addr %s228, 4
      %s230 = scalar_lea.vmem %s3, %s229
      %p231 = scmp.lt.s32.totalorder %s18, 1
      %s232 = scalar_select %p231, %s18, 1
      %p233 = scmp.lt.s32.totalorder %s19, 0
      %s234 = scalar_select %p233, %s19, 0
      %s235 = smul.addr %s234, 2
      %s236 = smul.addr %s232, 2
      %s237 = sadd.s32 %s235, %s236
      %s238 = smul.addr %s237, 4
      %s239 = scalar_lea.vmem %s0, %s238
      %p240 = scmp.lt.s32.totalorder %s18, 1
      %s241 = scalar_select %p240, %s18, 1
      %p242 = scmp.lt.s32.totalorder %s19, 0
      %s243 = scalar_select %p242, %s19, 0
      %s244 = sadd.s32 %s243, %s241
      %s245 = smul.addr %s244, 4
      %s246 = scalar_lea.vmem %s1, %s245
      %p247 = scmp.lt.s32.totalorder %s18, 1
      %s248 = scalar_select %p247, %s18, 1
      %p249 = scmp.lt.s32.totalorder %s19, 0
      %s250 = scalar_select %p249, %s19, 0
      %s251 = sadd.s32 %s250, %s248
      %s252 = smul.addr %s251, 4
      %s253 = scalar_lea.vmem %s2, %s252
      %p254 = scmp.lt.s32.totalorder %s18, 1
      %s255 = scalar_select %p254, %s18, 1
      %p256 = scmp.lt.s32.totalorder %s19, 0
      %s257 = scalar_select %p256, %s19, 0
      %s258 = smul.addr %s257, 2
      %s259 = smul.addr %s255, 2
      %s260 = sadd.s32 %s258, %s259
      %s261 = smul.addr %s260, 4
      %s262 = scalar_lea.vmem %s3, %s261
      %v263 = vld [vmem:[%s239] sm:$0xff]
      %v265 = vcombine.high %v263, %v263
      %vm267 = vcmask 1043456
      %v268 = vsel %vm267, %v263, 0.0
      %v269 = vsel %vm267, %v265, 0.0
      %v270 = vadd.f32 %v268, %v269
      %271 = vadd.xlane.f32.xlu0 %v270
      %v272 = vpop.xlane.xlu0 %271
      %v273 = vmul.f32 %v263, %v263
      %v275 = vcombine.high %v273, %v273
      %v277 = vsel %vm267, %v273, 0.0
      %v278 = vsel %vm267, %v275, 0.0
      %v279 = vadd.f32 %v277, %v278
      %280 = vadd.xlane.f32.xlu0 %v279
      %v281 = vpop.xlane.xlu0 %280
      %v282 = vmul.f32 %v272, 0.00390625
      %v283 = vmul.f32 %v281, 0.00390625
      %v284 = vmul.f32 %v282, %v282
      %v285 = vsub.f32 %v283, %v284
      %v286 = vmax.f32 %v285, 0.0
      %v287 = vadd.f32 %v286, 1e-05
      %v288 = vrsqrt.pop %v287
      %v289 = vld [vmem:[%s253] sm:$0xf]
      %v290 = vadd.f32 %v289, 1.0
      %v291 = vmul.f32 %v288, %v290
      %v292 = vld [vmem:[%s246] sm:$0xf]
      %v293 = vmul.f32 %v282, %v291
      %v294 = vsub.f32 %v292, %v293
      %296 = vset.pattern.permute.xlu0 0
      %297 = vperm.xlu0 %296, %v291
      %v298 = vpop.permute.xlu0 %297
      %v300 = vunpack.c.l.s4 839922192
      %v301 = vunpack.c.0.s8 %v300
      %v302 = vlaneseq
      %v303 = vshrl.u32 %v302, 7
      %v304 = vsub.s32 %v301, %v303
      %v305 = vrot.slane %v298, %v304
      %v307 = vmul.f32 %v263, %v305
      %309 = vset.pattern.permute.xlu0 0
      %310 = vperm.xlu0 %309, %v294
      %v311 = vpop.permute.xlu0 %310
      %v313 = vunpack.c.l.s4 839922192
      %v314 = vunpack.c.0.s8 %v313
      %v315 = vlaneseq
      %v316 = vshrl.u32 %v315, 7
      %v317 = vsub.s32 %v314, %v316
      %v318 = vrot.slane %v311, %v317
      %v320 = vadd.f32 %v307, %v318
      %321 = vst [vmem:[%s262] sm:$0xff] %v320
      %p322 = scmp.lt.s32.totalorder %s18, 1
      %s323 = scalar_select %p322, %s18, 1
      %p324 = scmp.lt.s32.totalorder %s19, 0
      %s325 = scalar_select %p324, %s19, 0
      %s326 = smul.addr %s325, 2
      %s327 = smul.addr %s323, 2
      %s328 = sadd.s32 %s326, %s327
      %s329 = smul.addr %s328, 4
      %s330 = scalar_lea.vmem %s3, %s329
      // Predicated region
      $region33: #{adain_forward.1} parent=31 // pred_check
        %p331 = pneg %p130
      $region34: #{adain_forward.1} parent=31 // pred_check_branch
        %333 = sbr.rel (%p331) target = $region36
      $region35: #{adain_forward.1} parent=31 // pred_region
        _
      $region36: #{adain_forward.1} parent=31 // pred_fallthru
        _
    $region32: #{adain_forward.1} parent=5 // pred_fallthru
      _
    %p334 = scmp.le.s32.totalorder 2, %s9
    // Predicated region
    $region37: #{adain_forward.1} parent=5 // pred_check
      %p335 = pneg %p334
    $region38: #{adain_forward.1} parent=5 // pred_check_branch
      %337 = sbr.rel (%p335) target = $region40
    $region39: #{adain_forward.1} parent=5 // pred_region
      %s338 = ssub.s32 %s9, 2
      // Predicated region
      $region41: #{adain_forward.1} parent=39 // pred_check
        %p339 = pneg %p136
      $region42: #{adain_forward.1} parent=39 // pred_check_branch
        %341 = sbr.rel (%p339) target = $region44
      $region43: #{adain_forward.1} parent=39 // pred_region
        %p342 = scmp.lt.s32.totalorder %s20, 1
        %s343 = scalar_select %p342, %s20, 1
        %p344 = scmp.lt.s32.totalorder %s21, 0
        %s345 = scalar_select %p344, %s21, 0
        %s346 = smul.addr %s345, 2
        %s347 = smul.addr %s343, 2
        %s348 = sadd.s32 %s346, %s347
        %s349 = smul.addr %s348, 4
        %s350 = scalar_lea.vmem %s3, %s349
      $region44: #{adain_forward.1} parent=39 // pred_fallthru
        _
    $region40: #{adain_forward.1} parent=5 // pred_fallthru
      _
  $region6: #{adain_forward.1} parent=0 // loop_footer
    %s13 = sadd.s32 1, %s9
  $region7: #{adain_forward.1} parent=0 // loop_footer_branch
    %8 = sbr.rel target = $region3
  $region8: #{adain_forward.1} parent=0 // loop_exit
    _

</llo_original>
